<compile_context>
chip_gen: v7x
topology: tpu7x:2x2x1
jax: 0.10.0
libtpu: 0.0.40
codegen_flags: <defaults>
</compile_context>

<pallas_src>
import functools

import jax
import jax.numpy as jnp
from jax.experimental import pallas as pl
from jax.experimental.pallas import tpu as pltpu


def _lrp_sum_kernel(l_tile, s_ref, aj_ref, out_ref):
    # s_ref:   (1, l_tile, c_tile, 1)   f32 = rK / (aK + e*sign(aK)), lane-broadcast ready
    # aj_ref:  (1, c_tile, t_hw)        activations, native dtype, lane-dense spatial tile
    # out_ref: (1, l_tile, c_tile, t_hw)
    #
    # Partial (boundary) blocks along l / c / hw are safe: the stale tail of the input buffers
    # only feeds values whose writeback is masked by Pallas.
    aj = aj_ref[0]                                   # (c_tile, t_hw): reused for every l

    def emit(l):
        # f32 math via promotion (s is f32); single cast at the store.
        out_ref[0, l] = (aj * s_ref[0, l]).astype(out_ref.dtype)

    if l_tile <= 8:
        for l in range(l_tile):                      # short static unroll
            emit(l)
    else:
        def body(l, carry):
            emit(l)
            return carry
        jax.lax.fori_loop(0, l_tile, body, None, unroll=True)


def lrp_sum_pallas(rK, aJ, aK, e):
    """rK: (B, L, C), aJ: (B, C, H, W), aK: (B, C) -> rJ: (B, L, C, H, W)."""
    B, L, C = rK.shape
    Bj, Cj, H, W = aJ.shape
    assert Bj == B and Cj == C and aK.shape == (B, C)
    HW = H * W

    aj_dtype = aJ.dtype
    out_dtype = jnp.promote_types(rK.dtype, aJ.dtype)
    aj_isz = jnp.dtype(aj_dtype).itemsize
    out_isz = jnp.dtype(out_dtype).itemsize

    # ---- s = rK / (aK + e*sign(aK)) computed once, in f32, laid out (B, L, C, 1) so the
    #      in-kernel op is a pure lane-broadcast multiply. sign(0) -> +1 keeps the stabilizer. ----
    aK32 = aK.astype(jnp.float32)
    sign = jnp.where(aK32 >= 0, jnp.float32(1.0), jnp.float32(-1.0))
    z = aK32 + jnp.float32(e) * sign                              # (B, C)
    s = (rK.astype(jnp.float32) / z[:, None, :]).reshape(B, L, C, 1)

    # aJ kept in its native dtype; (B, C, H, W) -> (B, C, HW) reshape is layout-free.
    aj_flat = aJ.reshape(B, C, HW)

    # ---- generation-aware VMEM budget; sublane/lane-padding-correct footprint accounting ----
    try:
        vmem_cap = int(pltpu.get_tpu_info().vmem_capacity_bytes)
    except Exception:
        vmem_cap = 64 * 1024 * 1024                               # conservative (v7x) fallback
    budget = max((vmem_cap * 7) // 10, 8 * 1024 * 1024)           # bytes for pipelined blocks
    vmem_limit = int(max(min(vmem_cap - 2 * 1024 * 1024, (vmem_cap * 7) // 8), budget))

    def pad_to(x, m):
        return -(-x // m) * m

    sub_aj = max(8, (4 // aj_isz) * 8)      # sublane pack: 8 (f32) / 16 (bf16) / 32 (int8)
    sub_out = max(8, (4 // out_isz) * 8)
    sub_max = max(sub_aj, sub_out)

    def block_bytes(lt, ct, thw):
        lanes = pad_to(thw, 128)
        out_b = 2 * lt * pad_to(ct, sub_out) * lanes * out_isz    # double-buffered output
        aj_b = 2 * pad_to(ct, sub_aj) * lanes * aj_isz            # double-buffered aJ
        s_b = 2 * lt * pad_to(ct, 8) * 128 * 4                    # (..., C, 1) pads to 128 lanes
        return out_b + aj_b + s_b

    # 1) channel tile: full C unless even a 128-lane tile would not fit.
    #    (For tiny C (<8) some sublane padding is unavoidable with this layout;
    #     folding HW onto the sublane axis would recover it but is not needed here.)
    min_hw = min(HW, 128)
    c_tile = C
    if block_bytes(1, C, min_hw) > budget:
        c_tile = sub_max
        while c_tile + sub_max < C and block_bytes(1, c_tile + sub_max, min_hw) <= budget:
            c_tile += sub_max

    # 2) spatial tile: prefer the full extent (fewest, largest, fully contiguous DMAs);
    #    otherwise the largest 128-multiple that fits (final block partial / masked).
    if block_bytes(1, c_tile, HW) <= budget:
        t_hw = HW
    else:
        t_hw = min_hw
        cand = t_hw + 128
        while cand < HW and block_bytes(1, c_tile, cand) <= budget:
            t_hw = cand
            cand += 128

    # 3) l tile: largest budget-fitting value (no divisor requirement; final block partial).
    l_tile = 1
    l_cap = min(L, 64)
    while l_tile < l_cap and block_bytes(l_tile + 1, c_tile, t_hw) <= budget:
        l_tile += 1

    n_c = pl.cdiv(C, c_tile)
    n_hw = pl.cdiv(HW, t_hw)
    n_l = pl.cdiv(L, l_tile)

    # 4) keep both v7x TensorCores busy: guarantee >= 2 blocks along the "parallel" axes.
    if B * n_c * n_hw < 2 and HW > 128:
        t_hw = pad_to(pl.cdiv(HW, 2), 128)                        # 128-multiple, < HW
        n_hw = pl.cdiv(HW, t_hw)

    grid = (B, n_c, n_hw, n_l)
    kernel = functools.partial(_lrp_sum_kernel, l_tile)

    out = pl.pallas_call(
        kernel,
        out_shape=jax.ShapeDtypeStruct((B, L, C, HW), out_dtype),
        grid_spec=pltpu.PrefetchScalarGridSpec(
            num_scalar_prefetch=0,
            grid=grid,
            in_specs=[
                # s: tiny, re-DMAed per l step (fully overlapped by the pipeline); keeping it
                # resident for all of L would cost L x 128-lane-padded VMEM better spent on tiles.
                pl.BlockSpec((1, l_tile, c_tile, 1), lambda b, c, hw, l: (b, l, c, 0)),
                # aJ: index_map independent of the innermost l axis -> stays resident across l.
                pl.BlockSpec((1, c_tile, t_hw), lambda b, c, hw, l: (b, c, hw)),
            ],
            out_specs=pl.BlockSpec((1, l_tile, c_tile, t_hw), lambda b, c, hw, l: (b, l, c, hw)),
        ),
        compiler_params=pltpu.CompilerParams(
            dimension_semantics=("parallel", "parallel", "parallel", "arbitrary"),
            vmem_limit_bytes=vmem_limit,
        ),
        cost_estimate=pl.CostEstimate(
            flops=B * L * C * HW,
            transcendentals=0,
            bytes_accessed=B * C * HW * aj_isz + B * L * C * HW * out_isz + B * L * C * 4,
        ),
    )(s, aj_flat)

    return out.reshape(B, L, C, H, W)


def lrp_sum_ref(rK, aJ, aK, e):
    """Pure-JAX reference of the same semantics."""
    sign = jnp.where(aK >= 0, 1.0, -1.0).astype(jnp.float32)
    z = aK.astype(jnp.float32) + jnp.float32(e) * sign            # (B, C)
    s = rK.astype(jnp.float32) / z[:, None, :]                    # (B, L, C)
    out = aJ[:, None, :, :, :].astype(jnp.float32) * s[:, :, :, None, None]
    return out.astype(jnp.promote_types(rK.dtype, aJ.dtype))      # (B, L, C, H, W)


if __name__ == "__main__":
    B, L, C, H, W = 2, 4, 4, 16, 16
    e = 1e-2

    key = jax.random.PRNGKey(0)
    k1, k2 = jax.random.split(key)
    aJ = jax.random.normal(k1, (B, C, H, W), dtype=jnp.float32)   # activations before the sum
    aK = jnp.sum(aJ, axis=(-2, -1))                               # forward: spatial sum -> (B, C)
    rK = jax.random.normal(k2, (B, L, C), dtype=jnp.float32)      # per-class relevance at output

    rJ = lrp_sum_pallas(rK, aJ, aK, e)
    jax.block_until_ready(rJ)

    rJ_ref = lrp_sum_ref(rK, aJ, aK, e)
    assert rJ.shape == (B, L, C, H, W)
    assert jnp.allclose(rJ, rJ_ref, rtol=1e-5, atol=1e-5)

    print("KERNEL_OK")
</pallas_src>

<mosaic_0001>
module attributes {stable_mosaic.version = 11 : i64} {
  func.func @_lrp_sum_kernel(%arg0: i32, %arg1: i32, %arg2: i32, %arg3: i32, %arg4: memref<1x4x4x1xf32, #tpu.memory_space<vmem>>, %arg5: memref<1x4x256xf32, #tpu.memory_space<vmem>>, %arg6: memref<1x4x4x256xf32, #tpu.memory_space<vmem>>) attributes {dimension_semantics = [#tpu.dimension_semantics<parallel>, #tpu.dimension_semantics<parallel>, #tpu.dimension_semantics<parallel>, #tpu.dimension_semantics<arbitrary>], iteration_bounds = array<i64: 2, 1, 1, 1>, scalar_prefetch = 0 : i64, scratch_operands = 0 : i64, tpu.core_type = #tpu.core_type<tc>, window_params = [{transform_indices = @transform_0, window_bounds = array<i64: 1, 4, 4, 1>}, {transform_indices = @transform_1, window_bounds = array<i64: 1, 4, 256>}, {transform_indices = @transform_2, window_bounds = array<i64: 1, 4, 4, 256>}]} {
    %c0 = arith.constant 0 : index
    %c0_0 = arith.constant 0 : index
    %c0_1 = arith.constant 0 : index
    %0 = vector.load %arg5[%c0, %c0_0, %c0_1] : memref<1x4x256xf32, #tpu.memory_space<vmem>>, vector<1x4x256xf32>
    %1 = vector.shape_cast %0 : vector<1x4x256xf32> to vector<4x256xf32>
    %c0_2 = arith.constant 0 : index
    %c0_3 = arith.constant 0 : index
    %c0_4 = arith.constant 0 : index
    %c0_5 = arith.constant 0 : index
    %2 = vector.load %arg4[%c0_2, %c0_3, %c0_4, %c0_5] : memref<1x4x4x1xf32, #tpu.memory_space<vmem>>, vector<1x1x4x1xf32>
    %3 = vector.shape_cast %2 : vector<1x1x4x1xf32> to vector<4x1xf32>
    %4 = vector.broadcast %3 : vector<4x1xf32> to vector<4x256xf32>
    %5 = arith.mulf %1, %4 : vector<4x256xf32>
    %c0_6 = arith.constant 0 : index
    %c0_7 = arith.constant 0 : index
    %c0_8 = arith.constant 0 : index
    %c0_9 = arith.constant 0 : index
    %6 = vector.load %arg6[%c0_6, %c0_7, %c0_8, %c0_9] : memref<1x4x4x256xf32, #tpu.memory_space<vmem>>, vector<1x1x4x256xf32>
    %7 = vector.shape_cast %6 : vector<1x1x4x256xf32> to vector<4x256xf32>
    %8 = vector.shape_cast %5 : vector<4x256xf32> to vector<1x1x4x256xf32>
    tpu.vector_store %arg6[%c0_6, %c0_7, %c0_8, %c0_9], %8 {strides = array<i32>} : memref<1x4x4x256xf32, #tpu.memory_space<vmem>>, vector<1x1x4x256xf32>,
    %c0_10 = arith.constant 0 : index
    %c1 = arith.constant 1 : index
    %c0_11 = arith.constant 0 : index
    %c0_12 = arith.constant 0 : index
    %9 = vector.load %arg4[%c0_10, %c1, %c0_11, %c0_12] : memref<1x4x4x1xf32, #tpu.memory_space<vmem>>, vector<1x1x4x1xf32>
    %10 = vector.shape_cast %9 : vector<1x1x4x1xf32> to vector<4x1xf32>
    %11 = vector.broadcast %10 : vector<4x1xf32> to vector<4x256xf32>
    %12 = arith.mulf %1, %11 : vector<4x256xf32>
    %c0_13 = arith.constant 0 : index
    %c1_14 = arith.constant 1 : index
    %c0_15 = arith.constant 0 : index
    %c0_16 = arith.constant 0 : index
    %13 = vector.load %arg6[%c0_13, %c1_14, %c0_15, %c0_16] : memref<1x4x4x256xf32, #tpu.memory_space<vmem>>, vector<1x1x4x256xf32>
    %14 = vector.shape_cast %13 : vector<1x1x4x256xf32> to vector<4x256xf32>
    %15 = vector.shape_cast %12 : vector<4x256xf32> to vector<1x1x4x256xf32>
    tpu.vector_store %arg6[%c0_13, %c1_14, %c0_15, %c0_16], %15 {strides = array<i32>} : memref<1x4x4x256xf32, #tpu.memory_space<vmem>>, vector<1x1x4x256xf32>,
    %c0_17 = arith.constant 0 : index
    %c2 = arith.constant 2 : index
    %c0_18 = arith.constant 0 : index
    %c0_19 = arith.constant 0 : index
    %16 = vector.load %arg4[%c0_17, %c2, %c0_18, %c0_19] : memref<1x4x4x1xf32, #tpu.memory_space<vmem>>, vector<1x1x4x1xf32>
    %17 = vector.shape_cast %16 : vector<1x1x4x1xf32> to vector<4x1xf32>
    %18 = vector.broadcast %17 : vector<4x1xf32> to vector<4x256xf32>
    %19 = arith.mulf %1, %18 : vector<4x256xf32>
    %c0_20 = arith.constant 0 : index
    %c2_21 = arith.constant 2 : index
    %c0_22 = arith.constant 0 : index
    %c0_23 = arith.constant 0 : index
    %20 = vector.load %arg6[%c0_20, %c2_21, %c0_22, %c0_23] : memref<1x4x4x256xf32, #tpu.memory_space<vmem>>, vector<1x1x4x256xf32>
    %21 = vector.shape_cast %20 : vector<1x1x4x256xf32> to vector<4x256xf32>
    %22 = vector.shape_cast %19 : vector<4x256xf32> to vector<1x1x4x256xf32>
    tpu.vector_store %arg6[%c0_20, %c2_21, %c0_22, %c0_23], %22 {strides = array<i32>} : memref<1x4x4x256xf32, #tpu.memory_space<vmem>>, vector<1x1x4x256xf32>,
    %c0_24 = arith.constant 0 : index
    %c3 = arith.constant 3 : index
    %c0_25 = arith.constant 0 : index
    %c0_26 = arith.constant 0 : index
    %23 = vector.load %arg4[%c0_24, %c3, %c0_25, %c0_26] : memref<1x4x4x1xf32, #tpu.memory_space<vmem>>, vector<1x1x4x1xf32>
    %24 = vector.shape_cast %23 : vector<1x1x4x1xf32> to vector<4x1xf32>
    %25 = vector.broadcast %24 : vector<4x1xf32> to vector<4x256xf32>
    %26 = arith.mulf %1, %25 : vector<4x256xf32>
    %c0_27 = arith.constant 0 : index
    %c3_28 = arith.constant 3 : index
    %c0_29 = arith.constant 0 : index
    %c0_30 = arith.constant 0 : index
    %27 = vector.load %arg6[%c0_27, %c3_28, %c0_29, %c0_30] : memref<1x4x4x256xf32, #tpu.memory_space<vmem>>, vector<1x1x4x256xf32>
    %28 = vector.shape_cast %27 : vector<1x1x4x256xf32> to vector<4x256xf32>
    %29 = vector.shape_cast %26 : vector<4x256xf32> to vector<1x1x4x256xf32>
    tpu.vector_store %arg6[%c0_27, %c3_28, %c0_29, %c0_30], %29 {strides = array<i32>} : memref<1x4x4x256xf32, #tpu.memory_space<vmem>>, vector<1x1x4x256xf32>,
    return
  }
  func.func @transform_0(%arg0: i32, %arg1: i32, %arg2: i32, %arg3: i32) -> (i32, i32, i32, i32) {
    %c0_i32 = arith.constant 0 : i32
    %c0_i32_0 = arith.constant 0 : i32
    return %arg0, %arg3, %arg1, %c0_i32 : i32, i32, i32, i32
  }
  func.func @transform_1(%arg0: i32, %arg1: i32, %arg2: i32, %arg3: i32) -> (i32, i32, i32) {
    %c0_i32 = arith.constant 0 : i32
    return %arg0, %arg1, %arg2 : i32, i32, i32
  }
  func.func @transform_2(%arg0: i32, %arg1: i32, %arg2: i32, %arg3: i32) -> (i32, i32, i32, i32) {
    %c0_i32 = arith.constant 0 : i32
    return %arg0, %arg3, %arg1, %arg2 : i32, i32, i32, i32
  }
}

</mosaic_0001>

<llo_original>
// kernel: tpu_custom_call.1
$region0: #{tpu_custom_call.1}
  #allocation0 [shape = 'u32[]', space=smem, size = 0x4, offset = 0x4, fixed_abs, tag = 'smem constant byte address 0x4 - core index']
  #allocation1 [shape = 'u32[144,128]{1,0:T(1,128)}', space=vmem, size = 0x12000, scoped, tag = 'internal scratch']
  %s0 = inlined_call_operand.vmem [shape: f32[2,4,4,1], index: 0, kind: input, shape index: {}]
  %s1 = inlined_call_operand.vmem [shape: f32[2,4,256], index: 1, kind: input, shape index: {}]
  %s2 = inlined_call_operand.hbm [shape: f32[2,4,4,256], index: 2, kind: output, shape index: {}]
  %s3 = sld [smem:[#allocation0]]
  $region41: #{tpu_custom_call.1} parent=0
    _
  %s5 = ssub.s32 1, %s3
  %s6 = scalar_select 0, %s5, %s3
  $region1: #{tpu_custom_call.1} parent=0
    #allocation2 [shape = 'u8[32768]{0}', space=vmem, size = 0x8000, scoped, tag = 'output window, operand 0']
    #allocation3 [shape = 's32[2]{0}', space=sflag, size = 0x8, scoped, tag = 'scoped memory for tpu_custom_call.1']
    %7 = vsyncpa [#allocation3], 0
    %s8 = scalar_lea.sflag [#allocation3], 1
    %9 = vsyncpa %s8, 0
    loop: start=0, step=1, limit=4
    $region2: #{tpu_custom_call.1} parent=1 // loop_pre_header
      _
    $region3: #{tpu_custom_call.1} parent=1 // loop_header
      %s11 = sphi 0, %s15
      %p12 = scmp.ge.s32.totalorder %s11, 4
      %s18 = sphi 0, %s44
      %s19 = sphi 0, %s40
      %s20 = sphi 0, %s36
      %s21 = sphi 0, %s32
      %s22 = sphi 0, %s18
      %s23 = sphi 0, %s19
      %s24 = sphi 0, %s20
      %s25 = sphi 0, %s21
      %s26 = sphi 0, %s22
      %s27 = sphi 0, %s23
      %s28 = sphi 0, %s24
      %s29 = sphi 0, %s25
      %s51 = sphi 0, %s53
      %s54 = sphi 0, %s51
      %s55 = sphi 0, %s54
      %s71 = sphi 0, %s55
      %s81 = sphi 0, %s83
      %s84 = sphi 0, %s81
      %s85 = sphi 0, %s84
      %s101 = sphi 0, %s85
      %s113 = sphi 0, %s115
      %s116 = sphi 0, %s113
      %s117 = sphi 0, %s116
      %s133 = sphi 0, %s117
    $region4: #{tpu_custom_call.1} parent=1 // loop_header_branch
      %14 = sbr.rel (%p12) target = $region8
    $region5: #{tpu_custom_call.1} parent=1 // loop_body
      %s16 = ssub.s32 %s11, 1
      %s17 = ssub.s32 %s11, 2
      %s30 = sadd.s32 1, %s21
      %p31 = scmp.ge.s32.totalorder %s30, 1
      %s32 = scalar_select %p31, 0, %s30
      %s33 = sadd.s32 1, %s20
      %s34 = scalar_select %p31, %s33, %s20
      %p35 = scmp.ge.s32.totalorder %s34, 1
      %s36 = scalar_select %p35, 0, %s34
      %s37 = sadd.s32 1, %s19
      %s38 = scalar_select %p35, %s37, %s19
      %p39 = scmp.ge.s32.totalorder %s38, 1
      %s40 = scalar_select %p39, 0, %s38
      %s41 = sadd.s32 1, %s18
      %s42 = scalar_select %p39, %s41, %s18
      %p43 = scmp.ge.s32.totalorder %s42, 2
      %s44 = scalar_select %p43, 0, %s42
      %s45 = ssub.s32 %s18, %s44
      %s46 = ssub.s32 %s21, %s32
      %s47 = sor.u32 %s45, %s46
      %s48 = ssub.s32 %s19, %s40
      %s49 = sor.u32 %s47, %s48
      %p50 = scmp.eq.s32.totalorder %s49, 0
      %s52 = sadd.s32 %s51, 1
      %s53 = scalar_select %p50, %s51, %s52
      %p56 = pneg %p50
      %p57 = scmp.eq.s32.totalorder %s11, 1
      %p58 = por %p56, %p57
      %p59 = scmp.ne.s32.totalorder %s51, %s54
      %p60 = scmp.eq.s32.totalorder %s11, 0
      %p61 = por %p59, %p60
      %p62 = scmp.ne.s32.totalorder %s51, %s54
      %p63 = scmp.eq.s32.totalorder %s16, 1
      %p64 = por %p62, %p63
      %p65 = scmp.ne.s32.totalorder %s54, %s55
      %p66 = scmp.eq.s32.totalorder %s16, 0
      %p67 = por %p65, %p66
      %p68 = scmp.ne.s32.totalorder %s54, %s55
      %p69 = scmp.eq.s32.totalorder %s17, 1
      %p70 = por %p68, %p69
      %p72 = scmp.ne.s32.totalorder %s55, %s71
      %p73 = scmp.eq.s32.totalorder %s17, 0
      %p74 = por %p72, %p73
      %s75 = ssub.s32 %s18, %s44
      %s76 = ssub.s32 %s19, %s40
      %s77 = sor.u32 %s75, %s76
      %s78 = ssub.s32 %s20, %s36
      %s79 = sor.u32 %s77, %s78
      %p80 = scmp.eq.s32.totalorder %s79, 0
      %s82 = sadd.s32 %s81, 1
      %s83 = scalar_select %p80, %s81, %s82
      %p86 = pneg %p80
      %p87 = scmp.eq.s32.totalorder %s11, 1
      %p88 = por %p86, %p87
      %p89 = scmp.ne.s32.totalorder %s81, %s84
      %p90 = scmp.eq.s32.totalorder %s11, 0
      %p91 = por %p89, %p90
      %p92 = scmp.ne.s32.totalorder %s81, %s84
      %p93 = scmp.eq.s32.totalorder %s16, 1
      %p94 = por %p92, %p93
      %p95 = scmp.ne.s32.totalorder %s84, %s85
      %p96 = scmp.eq.s32.totalorder %s16, 0
      %p97 = por %p95, %p96
      %p98 = scmp.ne.s32.totalorder %s84, %s85
      %p99 = scmp.eq.s32.totalorder %s17, 1
      %p100 = por %p98, %p99
      %p102 = scmp.ne.s32.totalorder %s85, %s101
      %p103 = scmp.eq.s32.totalorder %s17, 0
      %p104 = por %p102, %p103
      %s105 = ssub.s32 %s18, %s44
      %s106 = ssub.s32 %s21, %s32
      %s107 = sor.u32 %s105, %s106
      %s108 = ssub.s32 %s19, %s40
      %s109 = sor.u32 %s107, %s108
      %s110 = ssub.s32 %s20, %s36
      %s111 = sor.u32 %s109, %s110
      %p112 = scmp.eq.s32.totalorder %s111, 0
      %s114 = sadd.s32 %s113, 1
      %s115 = scalar_select %p112, %s113, %s114
      %p118 = pneg %p112
      %p119 = scmp.eq.s32.totalorder %s11, 1
      %p120 = por %p118, %p119
      %p121 = scmp.ne.s32.totalorder %s113, %s116
      %p122 = scmp.eq.s32.totalorder %s11, 0
      %p123 = por %p121, %p122
      %p124 = scmp.ne.s32.totalorder %s113, %s116
      %p125 = scmp.eq.s32.totalorder %s16, 1
      %p126 = por %p124, %p125
      %p127 = scmp.ne.s32.totalorder %s116, %s117
      %p128 = scmp.eq.s32.totalorder %s16, 0
      %p129 = por %p127, %p128
      %p130 = scmp.ne.s32.totalorder %s116, %s117
      %p131 = scmp.eq.s32.totalorder %s17, 1
      %p132 = por %p130, %p131
      %p134 = scmp.ne.s32.totalorder %s117, %s133
      %p135 = scmp.eq.s32.totalorder %s17, 0
      %p136 = por %p134, %p135
      %p137 = scmp.le.s32.totalorder 1, %s11
      %p138 = scmp.lt.s32.totalorder %s11, 3
      %p139 = pnand %p137, %p138
      %p140 = pneg %p139
      // Predicated region
      $region9: #{tpu_custom_call.1} parent=5 // pred_check
        _
      $region10: #{tpu_custom_call.1} parent=5 // pred_check_branch
        %142 = sbr.rel (%p139) target = $region12
      $region11: #{tpu_custom_call.1} parent=5 // pred_region
        %s143 = ssub.s32 %s11, 1
      $region12: #{tpu_custom_call.1} parent=5 // pred_fallthru
        _
      %p144 = scmp.lt.s32.totalorder %s11, 2
      // Predicated region
      $region13: #{tpu_custom_call.1} parent=5 // pred_check
        %p145 = pneg %p144
      $region14: #{tpu_custom_call.1} parent=5 // pred_check_branch
        %147 = sbr.rel (%p145) target = $region16
      $region15: #{tpu_custom_call.1} parent=5 // pred_region
        // Predicated region
        $region17: #{tpu_custom_call.1} parent=15 // pred_check
          %p148 = pneg %p61
        $region18: #{tpu_custom_call.1} parent=15 // pred_check_branch
          %150 = sbr.rel (%p148) target = $region20
        $region19: #{tpu_custom_call.1} parent=15 // pred_region
          %s151 = smul.u32 4, %s21
          %p152 = scmp.lt.s32.totalorder %s18, 1
          %s153 = scalar_select %p152, %s18, 1
          %p154 = scmp.lt.s32.totalorder %s151, 3
          %s155 = scalar_select %p154, %s151, 3
          %p156 = scmp.lt.s32.totalorder %s19, 0
          %s157 = scalar_select %p156, %s19, 0
          %s158 = sadd.s32 %s157, %s155
          %s159 = smul.addr %s153, 4
          %s160 = sadd.s32 %s158, %s159
          %s161 = smul.addr %s160, 4
          %s162 = scalar_lea.vmem %s0, %s161
          %s163 = smul.u32 4, %s21
        $region20: #{tpu_custom_call.1} parent=15 // pred_fallthru
          _
        // Predicated region
        $region21: #{tpu_custom_call.1} parent=15 // pred_check
          %p164 = pneg %p91
        $region22: #{tpu_custom_call.1} parent=15 // pred_check_branch
          %166 = sbr.rel (%p164) target = $region24
        $region23: #{tpu_custom_call.1} parent=15 // pred_region
          %s167 = smul.u32 2, %s20
          %p168 = scmp.lt.s32.totalorder %s18, 1
          %s169 = scalar_select %p168, %s18, 1
          %p170 = scmp.lt.s32.totalorder %s19, 0
          %s171 = scalar_select %p170, %s19, 0
          %p172 = scmp.lt.s32.totalorder %s167, 1
          %s173 = scalar_select %p172, %s167, 1
          %s174 = smul.addr %s171, 2
          %s175 = sadd.s32 %s173, %s174
          %s176 = smul.addr %s169, 2
          %s177 = sadd.s32 %s175, %s176
          %s178 = smul.addr %s177, 4
          %s179 = scalar_lea.vmem %s1, %s178
          %s180 = smul.u32 2, %s20
        $region24: #{tpu_custom_call.1} parent=15 // pred_fallthru
          _
      $region16: #{tpu_custom_call.1} parent=5 // pred_fallthru
        _
      %p181 = scmp.le.s32.totalorder 1, %s11
      %p182 = scmp.lt.s32.totalorder %s11, 3
      %p183 = pnand %p181, %p182
      %p184 = pneg %p183
      // Predicated region
      $region25: #{tpu_custom_call.1} parent=5 // pred_check
        _
      $region26: #{tpu_custom_call.1} parent=5 // pred_check_branch
        %186 = sbr.rel (%p183) target = $region28
      $region27: #{tpu_custom_call.1} parent=5 // pred_region
        %s187 = ssub.s32 %s11, 1
        %s188 = smul.u32 4, %s25
        %p189 = scmp.lt.s32.totalorder %s22, 1
        %s190 = scalar_select %p189, %s22, 1
        %p191 = scmp.lt.s32.totalorder %s188, 3
        %s192 = scalar_select %p191, %s188, 3
        %p193 = scmp.lt.s32.totalorder %s23, 0
        %s194 = scalar_select %p193, %s23, 0
        %s195 = sadd.s32 %s194, %s192
        %s196 = smul.addr %s190, 4
        %s197 = sadd.s32 %s195, %s196
        %s198 = smul.addr %s197, 4
        %s199 = scalar_lea.vmem %s0, %s198
        %p200 = pneg %p67
        %p201 = pneg %p64
        %s202 = smul.u32 2, %s24
        %p203 = scmp.lt.s32.totalorder %s22, 1
        %s204 = scalar_select %p203, %s22, 1
        %p205 = scmp.lt.s32.totalorder %s23, 0
        %s206 = scalar_select %p205, %s23, 0
        %p207 = scmp.lt.s32.totalorder %s202, 1
        %s208 = scalar_select %p207, %s202, 1
        %s209 = smul.addr %s206, 2
        %s210 = sadd.s32 %s208, %s209
        %s211 = smul.addr %s204, 2
        %s212 = sadd.s32 %s210, %s211
        %s213 = smul.addr %s212, 4
        %s214 = scalar_lea.vmem %s1, %s213
        %p215 = pneg %p97
        %p216 = pneg %p94
        %p217 = pneg %p129
        %p218 = pneg %p126
        %s219 = sand.u32 %s116, 1
        %s220 = scalar_lea.sflag [#allocation3], %s219
        %s221 = sand.u32 %s116, 1
        %s222 = smul.addr %s221, 32
        %s223 = scalar_lea.vmem [#allocation2], %s222
        %s224 = smul.u32 4, %s25
        %p225 = scmp.lt.s32.totalorder %s22, 1
        %s226 = scalar_select %p225, %s22, 1
        %p227 = scmp.lt.s32.totalorder %s224, 3
        %s228 = scalar_select %p227, %s224, 3
        %p229 = scmp.lt.s32.totalorder %s23, 0
        %s230 = scalar_select %p229, %s23, 0
        %s231 = sadd.s32 %s230, %s228
        %s232 = smul.addr %s226, 4
        %s233 = sadd.s32 %s231, %s232
        %s234 = smul.addr %s233, 4
        %s235 = scalar_lea.vmem %s0, %s234
        %s236 = smul.u32 4, %s25
        %s237 = smul.u32 2, %s24
        %p238 = scmp.lt.s32.totalorder %s22, 1
        %s239 = scalar_select %p238, %s22, 1
        %p240 = scmp.lt.s32.totalorder %s23, 0
        %s241 = scalar_select %p240, %s23, 0
        %p242 = scmp.lt.s32.totalorder %s237, 1
        %s243 = scalar_select %p242, %s237, 1
        %s244 = smul.addr %s241, 2
        %s245 = sadd.s32 %s243, %s244
        %s246 = smul.addr %s239, 2
        %s247 = sadd.s32 %s245, %s246
        %s248 = smul.addr %s247, 4
        %s249 = scalar_lea.vmem %s1, %s248
        %s250 = smul.u32 2, %s24
        %s251 = smul.u32 4, %s25
        %s252 = smul.u32 2, %s24
        %v253 = vld [vmem:[%s249] sm:$0xff]
        %v254 = vld [vmem:[%s235] sm:$0xf]
        %256 = vset.pattern.permute.xlu0 0
        %257 = vperm.xlu0 %256, %v254
        %v258 = vpop.permute.xlu0 %257
        %v260 = vunpack.c.l.s4 839922192
        %v261 = vunpack.c.0.s8 %v260
        %v262 = vlaneseq
        %v263 = vshrl.u32 %v262, 7
        %v264 = vsub.s32 %v261, %v263
        %v265 = vrot.slane %v258, %v264
        %v267 = vmul.f32 %v253, %v265
        %268 = vst [vmem:[%s223] sm:$0xff] %v267
        %s269 = scalar_lea.vmem %s235, 4
        %v270 = vld [vmem:[%s269] sm:$0xf]
        %272 = vset.pattern.permute.xlu0 0
        %273 = vperm.xlu0 %272, %v270
        %v274 = vpop.permute.xlu0 %273
        %v276 = vunpack.c.l.s4 839922192
        %v277 = vunpack.c.0.s8 %v276
        %v278 = vlaneseq
        %v279 = vshrl.u32 %v278, 7
        %v280 = vsub.s32 %v277, %v279
        %v281 = vrot.slane %v274, %v280
        %v283 = vmul.f32 %v253, %v281
        %s284 = scalar_lea.vmem %s223, 8 [#allocation2]
        %285 = vst [vmem:[%s284] sm:$0xff] %v283
        %s286 = scalar_lea.vmem %s235, 8
        %v287 = vld [vmem:[%s286] sm:$0xf]
        %289 = vset.pattern.permute.xlu0 0
        %290 = vperm.xlu0 %289, %v287
        %v291 = vpop.permute.xlu0 %290
        %v293 = vunpack.c.l.s4 839922192
        %v294 = vunpack.c.0.s8 %v293
        %v295 = vlaneseq
        %v296 = vshrl.u32 %v295, 7
        %v297 = vsub.s32 %v294, %v296
        %v298 = vrot.slane %v291, %v297
        %v300 = vmul.f32 %v253, %v298
        %s301 = scalar_lea.vmem %s223, 16 [#allocation2]
        %302 = vst [vmem:[%s301] sm:$0xff] %v300
        %s303 = scalar_lea.vmem %s235, 12
        %v304 = vld [vmem:[%s303] sm:$0xf]
        %306 = vset.pattern.permute.xlu0 0
        %307 = vperm.xlu0 %306, %v304
        %v308 = vpop.permute.xlu0 %307
        %v310 = vunpack.c.l.s4 839922192
        %v311 = vunpack.c.0.s8 %v310
        %v312 = vlaneseq
        %v313 = vshrl.u32 %v312, 7
        %v314 = vsub.s32 %v311, %v313
        %v315 = vrot.slane %v308, %v314
        %v317 = vmul.f32 %v253, %v315
        %s318 = scalar_lea.vmem %s223, 24 [#allocation2]
        %319 = vst [vmem:[%s318] sm:$0xff] %v317
        %s320 = sand.u32 %s116, 1
        %s321 = scalar_lea.sflag [#allocation3], %s320
        %s322 = sand.u32 %s116, 1
        %s323 = smul.addr %s322, 32
        %s324 = scalar_lea.vmem [#allocation2], %s323
        // Predicated region
        $region29: #{tpu_custom_call.1} parent=27 // pred_check
          %p325 = pneg %p126
        $region30: #{tpu_custom_call.1} parent=27 // pred_check_branch
          %327 = sbr.rel (%p325) target = $region32
        $region31: #{tpu_custom_call.1} parent=27 // pred_region
          %s328 = smul.u32 4, %s25
          %s329 = smul.u32 2, %s24
          %s331 = ssub.s32 512, 512
          %332 = vsyncadd %s321, %s331
          %s333 = smul.addr %s23, 2
          %s334 = sadd.s32 %s329, %s333
          %s335 = smul.addr %s328, 2
          %s336 = sadd.s32 %s334, %s335
          %s337 = smul.addr %s22, 8
          %s338 = sadd.s32 %s336, %s337
          %s339 = smul.addr %s338, 64
          %s340 = scalar_lea.hbm %s2, %s339
          %s341 = sshll.u32 %s324, 4
          %s342 = int_to_ptr.vmem [resolvable:$true] %s341
          %347 = dma.vmem_to_hbm [thread:$0]  %s342, 512, %s340, %s321, 128, 128, 8
        $region32: #{tpu_custom_call.1} parent=27 // pred_fallthru
          _
      $region28: #{tpu_custom_call.1} parent=5 // pred_fallthru
        _
      %p348 = scmp.le.s32.totalorder 2, %s11
      // Predicated region
      $region33: #{tpu_custom_call.1} parent=5 // pred_check
        %p349 = pneg %p348
      $region34: #{tpu_custom_call.1} parent=5 // pred_check_branch
        %351 = sbr.rel (%p349) target = $region36
      $region35: #{tpu_custom_call.1} parent=5 // pred_region
        %s352 = ssub.s32 %s11, 2
        // Predicated region
        $region37: #{tpu_custom_call.1} parent=35 // pred_check
          %p353 = pneg %p132
        $region38: #{tpu_custom_call.1} parent=35 // pred_check_branch
          %355 = sbr.rel (%p353) target = $region40
        $region39: #{tpu_custom_call.1} parent=35 // pred_region
          %s356 = sand.u32 %s117, 1
          %s357 = scalar_lea.sflag [#allocation3], %s356
          %s358 = sand.u32 %s117, 1
          %s359 = smul.addr %s358, 32
          %s360 = scalar_lea.vmem [#allocation2], %s359
          %361 = dma.done %s357, 512
        $region40: #{tpu_custom_call.1} parent=35 // pred_fallthru
          _
      $region36: #{tpu_custom_call.1} parent=5 // pred_fallthru
        _
    $region6: #{tpu_custom_call.1} parent=1 // loop_footer
      %s15 = sadd.s32 1, %s11
    $region7: #{tpu_custom_call.1} parent=1 // loop_footer_branch
      %10 = sbr.rel target = $region3
    $region8: #{tpu_custom_call.1} parent=1 // loop_exit
      _
    %362 = vsyncpa [#allocation3], 1
    %s363 = scalar_lea.sflag [#allocation3], 1
    %364 = vsyncpa %s363, 1

</llo_original>
